<compile_context>
chip_gen: v5e
topology: v5e:2x2
jax: 0.10.0
libtpu: 0.0.40
codegen_flags: <defaults>
</compile_context>

<pallas_src>
import jax
import jax.numpy as jnp
from jax.experimental import pallas as pl
from jax.experimental.pallas import tpu as pltpu

LANE = 128
SMALL_BATCH_THRESHOLD = 256  # below this, plain XLA beats kernel launch + DMA setup


def _round_up(x, m):
    return ((x + m - 1) // m) * m


def actor_kernel(x_ref, w1_ref, w2_ref, w3_ref, b_ref, mu_ref):
    nout = mu_ref.shape[1]
    wdt = w1_ref.dtype  # f32 by default; bf16 if packed with mxu_dtype=bf16

    x = x_ref[...].astype(wdt)
    h1 = jnp.tanh(
        jnp.dot(x, w1_ref[...], preferred_element_type=jnp.float32) + b_ref[0:1, :])
    h2 = jnp.tanh(
        jnp.dot(h1.astype(wdt), w2_ref[...], preferred_element_type=jnp.float32)
        + b_ref[1:2, :])
    mu = (jnp.dot(h2.astype(wdt), w3_ref[...], preferred_element_type=jnp.float32)
          + b_ref[2:3, :nout])
    mu_ref[...] = mu.astype(mu_ref.dtype)


def _choose_batch_tile(batch, num_inputs, num_outputs):
    """Pick a batch tile: ~4 grid programs (v7x megacore + pipelining), big tiles
    to amortize the ~0.35 us per-step cost, bounded by a conservative VMEM budget."""
    if batch <= 8:
        return batch
    desired = max(8, _round_up(pl.cdiv(batch, 4), 8))
    # Keep double-buffered activation tiles to a few MiB (safe on v5e's 16 MiB
    # default scoped VMEM; weights/biases are ~tens of KiB and VMEM-resident).
    bytes_per_row = 4 * (num_inputs + num_outputs)
    vmem_cap = max(8, ((8 << 20) // (2 * bytes_per_row)) // 8 * 8)
    return min(desired, 8192, vmem_cap)


def actor_forward(x, packed, *, batch_tile=None, force_pallas=False):
    """x: (B, num_inputs) float32.  packed: output of pack_actor_params."""
    w1, w2, w3 = packed["w1"], packed["w2"], packed["w3"]
    bias_pack = packed["bias_pack"]
    num_outputs = packed["num_outputs"]

    B, num_inputs = x.shape
    wdt = w1.dtype

    if (not force_pallas) and B < SMALL_BATCH_THRESHOLD:
        # Small-batch fast path: pure XLA, fused; kernel overhead dominates here.
        h1 = jnp.tanh(jnp.dot(x.astype(wdt), w1,
                              preferred_element_type=jnp.float32) + bias_pack[0:1, :])
        h2 = jnp.tanh(jnp.dot(h1.astype(wdt), w2,
                              preferred_element_type=jnp.float32) + bias_pack[1:2, :])
        mu = (jnp.dot(h2.astype(wdt), w3, preferred_element_type=jnp.float32)
              + bias_pack[2:3, :num_outputs])
        return mu, jnp.ones_like(mu)

    TB = batch_tile if batch_tile is not None else _choose_batch_tile(
        B, num_inputs, num_outputs)
    grid = (pl.cdiv(B, TB),)

    mu = pl.pallas_call(
        actor_kernel,
        out_shape=jax.ShapeDtypeStruct((B, num_outputs), jnp.float32),
        grid=grid,
        in_specs=[
            pl.BlockSpec((TB, num_inputs), lambda i: (i, 0)),   # activations tile
            pl.BlockSpec(w1.shape, lambda i: (0, 0)),           # VMEM-resident
            pl.BlockSpec(w2.shape, lambda i: (0, 0)),           # VMEM-resident
            pl.BlockSpec(w3.shape, lambda i: (0, 0)),           # VMEM-resident
            pl.BlockSpec(bias_pack.shape, lambda i: (0, 0)),    # VMEM-resident
        ],
        out_specs=pl.BlockSpec((TB, num_outputs), lambda i: (i, 0)),  # no padding
        compiler_params=pltpu.CompilerParams(
            dimension_semantics=("parallel",)),                 # v7x: split across 2 TCs
    )(x, w1, w2, w3, bias_pack)

    # logstd = zeros -> std = exp(0) = 1; constant, no kernel work needed.
    std = jnp.ones_like(mu)
    return mu, std


def init_actor_params(key, num_inputs, hidden_size, num_outputs):
    """Mimics PyTorch nn.Linear defaults: U(-1/sqrt(fan_in), 1/sqrt(fan_in)) for
       weights and biases.  fc3: weight *= 0.1, bias *= 0.0 (as in __init__).
       Weights stored already transposed as (in_features, out_features)."""
    ks = jax.random.split(key, 6)

    def linear(kw, kb, fan_in, fan_out):
        bound = 1.0 / jnp.sqrt(float(fan_in))
        w = jax.random.uniform(kw, (fan_in, fan_out), jnp.float32, -bound, bound)
        b = jax.random.uniform(kb, (fan_out,), jnp.float32, -bound, bound)
        return w, b

    w1, b1 = linear(ks[0], ks[1], num_inputs, hidden_size)
    w2, b2 = linear(ks[2], ks[3], hidden_size, hidden_size)
    w3, b3 = linear(ks[4], ks[5], hidden_size, num_outputs)
    w3 = w3 * 0.1
    b3 = b3 * 0.0
    return {"w1": w1, "b1": b1, "w2": w2, "b2": b2, "w3": w3, "b3": b3}


def pack_actor_params(params, *, mxu_dtype=jnp.float32):
    """One-time packing (outside the hot path):
       - pad the hidden dim to a lane-dense multiple of 128 (zero padding keeps
         the math exact: padded activations are tanh(0)=0 and feed zero weights),
       - pack the three biases into a single (3, hidden_pad) f32 operand,
       - optionally store weights in bf16 for the MXU (bias/tanh stay f32)."""
    w1, w2, w3 = params["w1"], params["w2"], params["w3"]
    b1, b2, b3 = params["b1"], params["b2"], params["b3"]
    num_inputs, hidden = w1.shape
    num_outputs = w3.shape[1]
    hidden_pad = _round_up(hidden, LANE)

    w1p = jnp.zeros((num_inputs, hidden_pad), mxu_dtype)
    w1p = w1p.at[:, :hidden].set(w1.astype(mxu_dtype))
    w2p = jnp.zeros((hidden_pad, hidden_pad), mxu_dtype)
    w2p = w2p.at[:hidden, :hidden].set(w2.astype(mxu_dtype))
    w3p = jnp.zeros((hidden_pad, num_outputs), mxu_dtype)
    w3p = w3p.at[:hidden, :].set(w3.astype(mxu_dtype))

    bias_pack = jnp.zeros((3, hidden_pad), jnp.float32)
    bias_pack = bias_pack.at[0, :hidden].set(b1)
    bias_pack = bias_pack.at[1, :hidden].set(b2)
    bias_pack = bias_pack.at[2, :num_outputs].set(b3)

    return {"w1": w1p, "w2": w2p, "w3": w3p,
            "bias_pack": bias_pack, "num_outputs": num_outputs}


def actor_reference(x, p):
    h1 = jnp.tanh(x @ p["w1"] + p["b1"][None, :])
    h2 = jnp.tanh(h1 @ p["w2"] + p["b2"][None, :])
    mu = h2 @ p["w3"] + p["b3"][None, :]
    return mu, jnp.ones_like(mu)


if __name__ == "__main__":
    key = jax.random.PRNGKey(0)
    k_x, k_x2, k_p = jax.random.split(key, 3)

    batch = 8
    num_inputs = 16
    hidden_size = 32
    num_outputs = 4

    x = jax.random.normal(k_x, (batch, num_inputs), jnp.float32)
    params = init_actor_params(k_p, num_inputs, hidden_size, num_outputs)
    packed = pack_actor_params(params)

    # 1) Module test shape through the Pallas kernel (force past the small-batch
    #    fast path so the kernel itself is compiled and run).
    mu, std = actor_forward(x, packed, force_pallas=True)
    jax.block_until_ready((mu, std))

    mu_ref, std_ref = actor_reference(x, params)
    assert mu.shape == (batch, num_outputs) and std.shape == (batch, num_outputs)
    assert jnp.allclose(mu, mu_ref, atol=1e-5), "mu mismatch vs reference (B=8)"
    assert jnp.allclose(std, std_ref), "std mismatch vs reference (B=8)"

    # 2) Larger batch through the auto path: multi-program grid (both v7x TCs
    #    get work) + ragged last tile exercised.
    x2 = jax.random.normal(k_x2, (400, num_inputs), jnp.float32)
    mu2, std2 = actor_forward(x2, packed)
    jax.block_until_ready((mu2, std2))
    mu2_ref, _ = actor_reference(x2, params)
    assert mu2.shape == (400, num_outputs)
    assert jnp.allclose(mu2, mu2_ref, atol=1e-5), "mu mismatch vs reference (B=400)"
    assert jnp.allclose(std2, jnp.ones_like(mu2)), "std mismatch vs reference (B=400)"

    print("KERNEL_OK")
</pallas_src>

<mosaic_0001>
module attributes {stable_mosaic.version = 11 : i64} {
  func.func @actor_kernel(%arg0: i32, %arg1: memref<8x16xf32, #tpu.memory_space<vmem>>, %arg2: memref<16x128xf32, #tpu.memory_space<vmem>>, %arg3: memref<128x128xf32, #tpu.memory_space<vmem>>, %arg4: memref<128x4xf32, #tpu.memory_space<vmem>>, %arg5: memref<3x128xf32, #tpu.memory_space<vmem>>, %arg6: memref<8x4xf32, #tpu.memory_space<vmem>>) attributes {dimension_semantics = [#tpu.dimension_semantics<parallel>], iteration_bounds = array<i64: 1>, scalar_prefetch = 0 : i64, scratch_operands = 0 : i64, tpu.core_type = #tpu.core_type<tc>, window_params = [{transform_indices = @transform_0, window_bounds = array<i64: 8, 16>}, {pipeline_mode = #tpu.pipeline_mode<synchronous>, transform_indices = @transform_1, window_bounds = array<i64: 16, 128>}, {pipeline_mode = #tpu.pipeline_mode<synchronous>, transform_indices = @transform_2, window_bounds = array<i64: 128, 128>}, {pipeline_mode = #tpu.pipeline_mode<synchronous>, transform_indices = @transform_3, window_bounds = array<i64: 128, 4>}, {pipeline_mode = #tpu.pipeline_mode<synchronous>, transform_indices = @transform_4, window_bounds = array<i64: 3, 128>}, {transform_indices = @transform_5, window_bounds = array<i64: 8, 4>}]} {
    %c0 = arith.constant 0 : index
    %c0_0 = arith.constant 0 : index
    %0 = vector.load %arg1[%c0, %c0_0] : memref<8x16xf32, #tpu.memory_space<vmem>>, vector<8x16xf32>
    %c0_1 = arith.constant 0 : index
    %c0_2 = arith.constant 0 : index
    %1 = vector.load %arg2[%c0_1, %c0_2] : memref<16x128xf32, #tpu.memory_space<vmem>>, vector<16x128xf32>
    %cst = arith.constant dense<0.000000e+00> : vector<8x128xf32>
    %2 = tpu.matmul %0, %1, %cst {dimension_numbers = #tpu.dot_dimension_numbers<[1], [0], [0], [1], [0, 0, 1, 1], [], []>} : vector<8x16xf32>, vector<16x128xf32>, vector<8x128xf32> -> vector<8x128xf32>
    %c0_3 = arith.constant 0 : index
    %c0_4 = arith.constant 0 : index
    %3 = vector.load %arg5[%c0_3, %c0_4] : memref<3x128xf32, #tpu.memory_space<vmem>>, vector<1x128xf32>
    %4 = vector.broadcast %3 : vector<1x128xf32> to vector<8x128xf32>
    %5 = arith.addf %2, %4 : vector<8x128xf32>
    %6 = math.tanh %5 : vector<8x128xf32>
    %c0_5 = arith.constant 0 : index
    %c0_6 = arith.constant 0 : index
    %7 = vector.load %arg3[%c0_5, %c0_6] : memref<128x128xf32, #tpu.memory_space<vmem>>, vector<128x128xf32>
    %cst_7 = arith.constant dense<0.000000e+00> : vector<8x128xf32>
    %8 = tpu.matmul %6, %7, %cst_7 {dimension_numbers = #tpu.dot_dimension_numbers<[1], [0], [0], [1], [0, 0, 1, 1], [], []>} : vector<8x128xf32>, vector<128x128xf32>, vector<8x128xf32> -> vector<8x128xf32>
    %c1 = arith.constant 1 : index
    %c0_8 = arith.constant 0 : index
    %9 = vector.load %arg5[%c1, %c0_8] : memref<3x128xf32, #tpu.memory_space<vmem>>, vector<1x128xf32>
    %10 = vector.broadcast %9 : vector<1x128xf32> to vector<8x128xf32>
    %11 = arith.addf %8, %10 : vector<8x128xf32>
    %12 = math.tanh %11 : vector<8x128xf32>
    %c0_9 = arith.constant 0 : index
    %c0_10 = arith.constant 0 : index
    %13 = vector.load %arg4[%c0_9, %c0_10] : memref<128x4xf32, #tpu.memory_space<vmem>>, vector<128x4xf32>
    %cst_11 = arith.constant dense<0.000000e+00> : vector<8x4xf32>
    %14 = tpu.matmul %12, %13, %cst_11 {dimension_numbers = #tpu.dot_dimension_numbers<[1], [0], [0], [1], [0, 0, 1, 1], [], []>} : vector<8x128xf32>, vector<128x4xf32>, vector<8x4xf32> -> vector<8x4xf32>
    %c2 = arith.constant 2 : index
    %c0_12 = arith.constant 0 : index
    %15 = vector.load %arg5[%c2, %c0_12] : memref<3x128xf32, #tpu.memory_space<vmem>>, vector<1x4xf32>
    %16 = vector.broadcast %15 : vector<1x4xf32> to vector<8x4xf32>
    %17 = arith.addf %14, %16 : vector<8x4xf32>
    %c0_13 = arith.constant 0 : index
    %c0_14 = arith.constant 0 : index
    %18 = vector.load %arg6[%c0_13, %c0_14] : memref<8x4xf32, #tpu.memory_space<vmem>>, vector<8x4xf32>
    tpu.vector_store %arg6[%c0_13, %c0_14], %17 {strides = array<i32>} : memref<8x4xf32, #tpu.memory_space<vmem>>, vector<8x4xf32>,
    return
  }
  func.func @transform_0(%arg0: i32) -> (i32, i32) {
    %c0_i32 = arith.constant 0 : i32
    %c0_i32_0 = arith.constant 0 : i32
    return %arg0, %c0_i32 : i32, i32
  }
  func.func @transform_1(%arg0: i32) -> (i32, i32) {
    %c0_i32 = arith.constant 0 : i32
    %c0_i32_0 = arith.constant 0 : i32
    %c0_i32_1 = arith.constant 0 : i32
    return %c0_i32, %c0_i32_0 : i32, i32
  }
  func.func @transform_2(%arg0: i32) -> (i32, i32) {
    %c0_i32 = arith.constant 0 : i32
    %c0_i32_0 = arith.constant 0 : i32
    %c0_i32_1 = arith.constant 0 : i32
    return %c0_i32, %c0_i32_0 : i32, i32
  }
  func.func @transform_3(%arg0: i32) -> (i32, i32) {
    %c0_i32 = arith.constant 0 : i32
    %c0_i32_0 = arith.constant 0 : i32
    %c0_i32_1 = arith.constant 0 : i32
    return %c0_i32, %c0_i32_0 : i32, i32
  }
  func.func @transform_4(%arg0: i32) -> (i32, i32) {
    %c0_i32 = arith.constant 0 : i32
    %c0_i32_0 = arith.constant 0 : i32
    %c0_i32_1 = arith.constant 0 : i32
    return %c0_i32, %c0_i32_0 : i32, i32
  }
  func.func @transform_5(%arg0: i32) -> (i32, i32) {
    %c0_i32 = arith.constant 0 : i32
    %c0_i32_0 = arith.constant 0 : i32
    return %arg0, %c0_i32 : i32, i32
  }
}

</mosaic_0001>

<llo_original>
// kernel: tpu_custom_call.1
$region0: #{tpu_custom_call.1}
  #allocation0 [shape = 'u32[]', space=smem, size = 0x4, offset = 0x4, fixed_abs, tag = 'smem constant byte address 0x4 - core index']
  #allocation1 [shape = 'u32[72,128]{1,0:T(1,128)}', space=vmem, size = 0x9000, scoped, tag = 'internal scratch']
  %s0 = inlined_call_operand.hbm [shape: f32[8,16], index: 0, kind: input, shape index: {}]
  %s1 = inlined_call_operand.hbm [shape: f32[16,128], index: 1, kind: input, shape index: {}]
  %s2 = inlined_call_operand.vmem [shape: f32[128,128], index: 2, kind: input, shape index: {}]
  %s3 = inlined_call_operand.vmem [shape: f32[128,4], index: 3, kind: input, shape index: {}]
  %s4 = inlined_call_operand.vmem [shape: f32[3,128], index: 4, kind: input, shape index: {}]
  %s5 = inlined_call_operand.vmem [shape: f32[8,4], index: 5, kind: output, shape index: {}]
  %s6 = sld [smem:[#allocation0]]
  $region38: #{tpu_custom_call.1} parent=0
    _
  %s8 = ssub.s32 1, %s6
  %s9 = scalar_select 0, %s8, %s6
  $region1: #{tpu_custom_call.1} parent=0
    #allocation2 [shape = 'u8[4096]{0}', space=vmem, size = 0x1000, scoped, tag = 'input window, operand 0, single buffered']
    #allocation3 [shape = 's32[1]{0}', space=sflag, size = 0x4, scoped, tag = 'scoped memory for tpu_custom_call.1']
    #allocation4 [shape = 'u8[8192]{0}', space=vmem, size = 0x2000, scoped, tag = 'input window, operand 1, single buffered']
    #allocation5 [shape = 's32[1]{0}', space=sflag, size = 0x4, scoped, tag = 'scoped memory for tpu_custom_call.1']
    %10 = vsyncpa [#allocation3], 0
    %11 = vsyncpa [#allocation5], 0
    // Predicated region
    $region2: #{tpu_custom_call.1} parent=1 // pred_check
      _
    $region3: #{tpu_custom_call.1} parent=1 // pred_check_branch
      %13 = sbr.rel (0) target = $region5
    $region4: #{tpu_custom_call.1} parent=1 // pred_region
      %15 = vsyncadd [#allocation3], 0
      %s17 = sshll.u32 %s0, 4
      %s18 = int_to_ptr.hbm [resolvable:$true] %s17
      %s19 = sshll.u32 [#allocation2], 4
      %s20 = int_to_ptr.vmem [resolvable:$true] %s19
      %22 = dma.hbm_to_vmem [thread:$0]  %s18, 128, %s20, [#allocation3]
    $region5: #{tpu_custom_call.1} parent=1 // pred_fallthru
      _
    // Predicated region
    $region6: #{tpu_custom_call.1} parent=1 // pred_check
      _
    $region7: #{tpu_custom_call.1} parent=1 // pred_check_branch
      %24 = sbr.rel (0) target = $region9
    $region8: #{tpu_custom_call.1} parent=1 // pred_region
      %26 = vsyncadd [#allocation5], 0
      %s27 = sshll.u32 %s1, 4
      %s28 = int_to_ptr.hbm [resolvable:$true] %s27
      %s29 = sshll.u32 [#allocation4], 4
      %s30 = int_to_ptr.vmem [resolvable:$true] %s29
      %35 = dma.hbm_to_vmem [thread:$0]  %s28, 256, %s30, [#allocation5], 128, 128, 8
    $region9: #{tpu_custom_call.1} parent=1 // pred_fallthru
      _
    // Predicated region
    $region10: #{tpu_custom_call.1} parent=1 // pred_check
      _
    $region11: #{tpu_custom_call.1} parent=1 // pred_check_branch
      %37 = sbr.rel (0) target = $region13
    $region12: #{tpu_custom_call.1} parent=1 // pred_region
      _
    $region13: #{tpu_custom_call.1} parent=1 // pred_fallthru
      _
    // Predicated region
    $region14: #{tpu_custom_call.1} parent=1 // pred_check
      _
    $region15: #{tpu_custom_call.1} parent=1 // pred_check_branch
      %39 = sbr.rel (0) target = $region17
    $region16: #{tpu_custom_call.1} parent=1 // pred_region
      _
    $region17: #{tpu_custom_call.1} parent=1 // pred_fallthru
      _
    // Predicated region
    $region18: #{tpu_custom_call.1} parent=1 // pred_check
      _
    $region19: #{tpu_custom_call.1} parent=1 // pred_check_branch
      %41 = sbr.rel (0) target = $region21
    $region20: #{tpu_custom_call.1} parent=1 // pred_region
      _
    $region21: #{tpu_custom_call.1} parent=1 // pred_fallthru
      _
    // Predicated region
    $region22: #{tpu_custom_call.1} parent=1 // pred_check
      _
    $region23: #{tpu_custom_call.1} parent=1 // pred_check_branch
      %43 = sbr.rel (0) target = $region25
    $region24: #{tpu_custom_call.1} parent=1 // pred_region
      %45 = dma.done [#allocation3], 128
    $region25: #{tpu_custom_call.1} parent=1 // pred_fallthru
      _
    // Predicated region
    $region26: #{tpu_custom_call.1} parent=1 // pred_check
      _
    $region27: #{tpu_custom_call.1} parent=1 // pred_check_branch
      %47 = sbr.rel (0) target = $region29
    $region28: #{tpu_custom_call.1} parent=1 // pred_region
      %49 = dma.done [#allocation5], 256
    $region29: #{tpu_custom_call.1} parent=1 // pred_fallthru
      _
    %v50 = vld [vmem:[#allocation2] sm:$0xff]
    %v51 = vld [vmem:[#allocation4] sm:$0xff]
    %v52 = vld [vmem:[#allocation4 + $0x8] sm:$0xff]
    %v53 = vld [vmem:[%s4] sm:$0x1]
    %v54 = vperm.slane %v53, 0
    %vm55 = vcmask 130048
    %v57 = vsel %vm55, %v50, 0
    %59 = vmatpush.msra.mxu0 0.0
    %60 = vmatpush.msra.mxu0 0.0
    %61 = vmatpush.msra.mxu0 0.0
    %62 = vmatpush.msra.mxu0 0.0
    %63 = vmatpush.msra.mxu0 0.0
    %64 = vmatpush.msra.mxu0 0.0
    %65 = vmatpush.msra.mxu0 0.0
    %66 = vmatpush.msra.mxu0 0.0
    %67 = vmatpush.msra.mxu0 0.0
    %68 = vmatpush.msra.mxu0 0.0
    %69 = vmatpush.msra.mxu0 0.0
    %70 = vmatpush.msra.mxu0 0.0
    %71 = vmatpush.msra.mxu0 0.0
    %72 = vmatpush.msra.mxu0 0.0
    %73 = vmatpush.msra.mxu0 %v52
    %74 = vmatpush.msra.mxu0 %v51
    %75 = vmatmul.f32.gmra.mxu0 %v57
    %v76 = vpop.f32.mrf.mxu0
    %v77 = vadd.f32 %v54, %v76
    %78 = vdwg.mxu0
    %v79 = vtanh.pop %v77
    %v80 = vld [vmem:[%s2] sm:$0xff]
    %v81 = vld [vmem:[%s2 + $0x8] sm:$0xff]
    %v82 = vld [vmem:[%s2 + $0x10] sm:$0xff]
    %v83 = vld [vmem:[%s2 + $0x18] sm:$0xff]
    %v84 = vld [vmem:[%s2 + $0x20] sm:$0xff]
    %v85 = vld [vmem:[%s2 + $0x28] sm:$0xff]
    %v86 = vld [vmem:[%s2 + $0x30] sm:$0xff]
    %v87 = vld [vmem:[%s2 + $0x38] sm:$0xff]
    %v88 = vld [vmem:[%s2 + $0x40] sm:$0xff]
    %v89 = vld [vmem:[%s2 + $0x48] sm:$0xff]
    %v90 = vld [vmem:[%s2 + $0x50] sm:$0xff]
    %v91 = vld [vmem:[%s2 + $0x58] sm:$0xff]
    %v92 = vld [vmem:[%s2 + $0x60] sm:$0xff]
    %v93 = vld [vmem:[%s2 + $0x68] sm:$0xff]
    %v94 = vld [vmem:[%s2 + $0x70] sm:$0xff]
    %v95 = vld [vmem:[%s2 + $0x78] sm:$0xff]
    %v96 = vld [vmem:[%s4 + $0x1] sm:$0x1]
    %v97 = vperm.slane %v96, 0
    %98 = vmatpush.msra.mxu0 %v95
    %99 = vmatpush.msra.mxu0 %v94
    %100 = vmatpush.msra.mxu0 %v93
    %101 = vmatpush.msra.mxu0 %v92
    %102 = vmatpush.msra.mxu0 %v91
    %103 = vmatpush.msra.mxu0 %v90
    %104 = vmatpush.msra.mxu0 %v89
    %105 = vmatpush.msra.mxu0 %v88
    %106 = vmatpush.msra.mxu0 %v87
    %107 = vmatpush.msra.mxu0 %v86
    %108 = vmatpush.msra.mxu0 %v85
    %109 = vmatpush.msra.mxu0 %v84
    %110 = vmatpush.msra.mxu0 %v83
    %111 = vmatpush.msra.mxu0 %v82
    %112 = vmatpush.msra.mxu0 %v81
    %113 = vmatpush.msra.mxu0 %v80
    %114 = vmatmul.f32.gmra.mxu0 %v79
    %v115 = vpop.f32.mrf.mxu0
    %v116 = vadd.f32 %v97, %v115
    %117 = vdwg.mxu0
    %v118 = vtanh.pop %v116
    %v119 = vld [vmem:[%s3] sm:$0xff]
    %v120 = vld [vmem:[%s3 + $0x8] sm:$0xff]
    %v121 = vld [vmem:[%s3 + $0x10] sm:$0xff]
    %v122 = vld [vmem:[%s3 + $0x18] sm:$0xff]
    %v123 = vld [vmem:[%s3 + $0x20] sm:$0xff]
    %v124 = vld [vmem:[%s3 + $0x28] sm:$0xff]
    %v125 = vld [vmem:[%s3 + $0x30] sm:$0xff]
    %v126 = vld [vmem:[%s3 + $0x38] sm:$0xff]
    %v127 = vld [vmem:[%s3 + $0x40] sm:$0xff]
    %v128 = vld [vmem:[%s3 + $0x48] sm:$0xff]
    %v129 = vld [vmem:[%s3 + $0x50] sm:$0xff]
    %v130 = vld [vmem:[%s3 + $0x58] sm:$0xff]
    %v131 = vld [vmem:[%s3 + $0x60] sm:$0xff]
    %v132 = vld [vmem:[%s3 + $0x68] sm:$0xff]
    %v133 = vld [vmem:[%s3 + $0x70] sm:$0xff]
    %v134 = vld [vmem:[%s3 + $0x78] sm:$0xff]
    %v135 = vld [vmem:[%s4 + $0x2] sm:$0x1]
    %v136 = vperm.slane %v135, 0
    %137 = vmatpush.msra.mxu0 %v134
    %138 = vmatpush.msra.mxu0 %v133
    %139 = vmatpush.msra.mxu0 %v132
    %140 = vmatpush.msra.mxu0 %v131
    %141 = vmatpush.msra.mxu0 %v130
    %142 = vmatpush.msra.mxu0 %v129
    %143 = vmatpush.msra.mxu0 %v128
    %144 = vmatpush.msra.mxu0 %v127
    %145 = vmatpush.msra.mxu0 %v126
    %146 = vmatpush.msra.mxu0 %v125
    %147 = vmatpush.msra.mxu0 %v124
    %148 = vmatpush.msra.mxu0 %v123
    %149 = vmatpush.msra.mxu0 %v122
    %150 = vmatpush.msra.mxu0 %v121
    %151 = vmatpush.msra.mxu0 %v120
    %152 = vmatpush.msra.mxu0 %v119
    %153 = vmatmul.f32.gmra.mxu0 %v118
    %v154 = vpop.f32.mrf.mxu0
    %v155 = vadd.f32 %v136, %v154
    %156 = vdwg.mxu0
    %vm157 = vcmask 31744
    %158 = vst.msk [vmem:[%s5] sm:$0xff] %vm157, %v155
    // Predicated region
    $region30: #{tpu_custom_call.1} parent=1 // pred_check
      _
    $region31: #{tpu_custom_call.1} parent=1 // pred_check_branch
      %160 = sbr.rel (0) target = $region33
    $region32: #{tpu_custom_call.1} parent=1 // pred_region
      _
    $region33: #{tpu_custom_call.1} parent=1 // pred_fallthru
      _
    // Predicated region
    $region34: #{tpu_custom_call.1} parent=1 // pred_check
      _
    $region35: #{tpu_custom_call.1} parent=1 // pred_check_branch
      %162 = sbr.rel (0) target = $region37
    $region36: #{tpu_custom_call.1} parent=1 // pred_region
      _
    $region37: #{tpu_custom_call.1} parent=1 // pred_fallthru
      _
    %163 = vsyncpa [#allocation3], 1
    %164 = vsyncpa [#allocation5], 1

</llo_original>
